<compile_context>
chip_gen: v6e
topology: v6e:2x2x1
jax: 0.10.0
libtpu: 0.0.40
codegen_flags: <defaults>
</compile_context>

<pallas_src>
import functools

import jax
import jax.numpy as jnp
from jax import lax
from jax.experimental import pallas as pl
from jax.experimental.pallas import tpu as pltpu


def _attn_weights_kernel(q_ref, k_ref, p_ref, pe_ref, am_ref, kpm_ref, out_ref,
                         *, approx_recip: bool):
    # q_ref/k_ref: (S, Dq), p_ref: (S, Dp), pe_ref: (Dp, Ppad),
    # am_ref: (S, S) f32, kpm_ref: (1, S) f32, out_ref: (S, S)
    S = q_ref.shape[0]

    # content scores: q @ k^T -> (S, S), accumulated in f32 on the MXU (k not pre-transposed)
    qk = lax.dot_general(q_ref[...], k_ref[...],
                         dimension_numbers=(((1,), (1,)), ((), ())),
                         preferred_element_type=jnp.float32)

    # positional scores over all relative offsets: p @ pe -> (S, Ppad)
    pos_full = jnp.dot(p_ref[...], pe_ref[...], preferred_element_type=jnp.float32)

    # relative shift (torch as_strided): shifted[i, j] = pos_full[i, S-1-i+j]
    # Roll row i right by i with a single strided XLU rotate, then take columns [S-1, 2S-2].
    # Column indices never wrap and never touch the zero padding, so this is exact.
    rolled = pltpu.roll(pos_full, 0, 1, stride=1, stride_axis=0)
    pos_scores = rolled[:, S - 1:2 * S - 1]

    scores = qk + pos_scores

    # masked_fill with exactly -1000: attn_mask (S,S) OR key_padding_mask (1,S) broadcast over rows
    mask = jnp.logical_or(am_ref[...] != 0.0, kpm_ref[...] != 0.0)
    scores = jnp.where(mask, jnp.float32(-1000.0), scores)

    # softmax over the source (last) axis
    m = jnp.max(scores, axis=-1, keepdims=True)
    e = jnp.exp(scores - m)
    denom = jnp.sum(e, axis=-1, keepdims=True)
    if approx_recip:
        probs = e * pl.reciprocal(denom, approx=True)   # EUP slot, essentially free
    else:
        probs = e / denom                               # exact divide for the f32 path
    out_ref[...] = probs.astype(out_ref.dtype)


def rel_pos_attn_weights(x, pos_emb, w_in, b_in, w_pos,
                         attn_mask=None, key_padding_mask=None,
                         *, num_heads, query_head_dim, pos_head_dim,
                         compute_dtype=jnp.bfloat16):
    """Forward pass of RelPositionMultiheadAttentionWeights (eval mode)."""
    S, B, _ = x.shape
    H, Dq, Dp = num_heads, query_head_dim, pos_head_dim
    P = 2 * S - 1
    qdim = H * Dq

    # ---- plain-JAX glue: in_proj, head split; one (S,B,*) -> (B,H,S,*) relayout per tensor ----
    xp = jnp.einsum('sbe,oe->sbo', x, w_in) + b_in                       # (S, B, in_proj_dim)
    q = xp[..., :qdim].reshape(S, B, H, Dq).transpose(1, 2, 0, 3)        # (B, H, S, Dq)
    k = xp[..., qdim:2 * qdim].reshape(S, B, H, Dq).transpose(1, 2, 0, 3)  # (B, H, S, Dq)
    p = xp[..., 2 * qdim:].reshape(S, B, H, Dp).transpose(1, 2, 0, 3)    # (B, H, S, Dp)

    # linear_pos, head-major, zero-padded to a lane-aligned width (multiple of 128)
    pe = jnp.einsum('lp,op->lo', pos_emb.reshape(P, -1), w_pos)          # (P, H*Dp)
    pe = pe.reshape(P, H, Dp).transpose(1, 2, 0)                         # (H, Dp, P)
    Ppad = ((P + 127) // 128) * 128
    pe = jnp.pad(pe, ((0, 0), (0, 0), (0, Ppad - P)))                    # (H, Dp, Ppad)

    cd = jnp.dtype(compute_dtype)
    q, k, p, pe = (t.astype(cd) for t in (q, k, p, pe))

    # masks, un-broadcast (small; never materialize a (B,S,S) mask in HBM)
    am = (jnp.zeros((S, S), jnp.float32) if attn_mask is None
          else attn_mask.astype(jnp.float32))                            # (S, S)
    kpm = (jnp.zeros((B, 1, S), jnp.float32) if key_padding_mask is None
           else key_padding_mask.astype(jnp.float32).reshape(B, 1, S))   # (B, 1, S)

    kernel = functools.partial(_attn_weights_kernel,
                               approx_recip=(cd != jnp.dtype(jnp.float32)))

    return pl.pallas_call(
        kernel,
        out_shape=jax.ShapeDtypeStruct((H, B, S, S), jnp.float32),
        grid=(B, H),
        in_specs=[
            pl.BlockSpec((None, None, S, Dq), lambda b, h: (b, h, 0, 0)),   # q
            pl.BlockSpec((None, None, S, Dq), lambda b, h: (b, h, 0, 0)),   # k
            pl.BlockSpec((None, None, S, Dp), lambda b, h: (b, h, 0, 0)),   # p
            pl.BlockSpec((None, Dp, Ppad),    lambda b, h: (h, 0, 0)),      # pe (per head)
            pl.BlockSpec((S, S),              lambda b, h: (0, 0)),         # attn_mask (fetched once)
            pl.BlockSpec((None, 1, S),        lambda b, h: (b, 0, 0)),      # key_padding_mask
        ],
        out_specs=pl.BlockSpec((None, None, S, S), lambda b, h: (h, b, 0, 0)),
        compiler_params=pltpu.CompilerParams(
            dimension_semantics=("parallel", "parallel")),
    )(q, k, p, pe, am, kpm)


def _reference(x, pos_emb, w_in, b_in, w_pos, attn_mask, key_padding_mask,
               *, num_heads, query_head_dim, pos_head_dim):
    """Pure-JAX reference mirroring the PyTorch forward (eval mode), in float32."""
    S, B, _ = x.shape
    H, Dq, Dp = num_heads, query_head_dim, pos_head_dim
    P = 2 * S - 1
    xp = jnp.einsum('sbe,oe->sbo', x, w_in) + b_in
    qdim = Dq * H
    q = xp[..., :qdim].reshape(S, B, H, Dq).transpose(2, 1, 0, 3)
    k = xp[..., qdim:2 * qdim].reshape(S, B, H, Dq).transpose(2, 1, 3, 0)
    p = xp[..., 2 * qdim:].reshape(S, B, H, Dp).transpose(2, 1, 0, 3)
    scores = jnp.einsum('hbsd,hbdt->hbst', q, k)
    pe = jnp.einsum('lp,op->lo', pos_emb.reshape(P, -1), w_pos).reshape(P, H, Dp).transpose(1, 2, 0)
    pos_full = jnp.einsum('hbsd,hdm->hbsm', p, pe)               # (H, B, S, 2S-1)
    rows = jnp.arange(S)[:, None]
    cols = (S - 1) - jnp.arange(S)[:, None] + jnp.arange(S)[None, :]
    pos_shift = pos_full[:, :, rows, cols]                       # (H, B, S, S)
    scores = scores + pos_shift
    combined = jnp.broadcast_to(attn_mask[None, :, :], (B, S, S)) | key_padding_mask[:, None, :]
    scores = jnp.where(combined[None], -1000.0, scores)
    return jax.nn.softmax(scores, axis=-1)


if __name__ == "__main__":
    # small config consistent with the module
    embed_dim = 32
    pos_dim = 16
    num_heads = 4
    query_head_dim = 8
    pos_head_dim = 4
    seq_len = 8
    batch = 2
    in_proj_dim = (query_head_dim + query_head_dim + pos_head_dim) * num_heads  # 80

    key = jax.random.PRNGKey(0)
    k1, k2, k3, k4, k5 = jax.random.split(key, 5)

    # deterministic synthetic parameters (ScaledLinear initial_scale folded into init scale)
    w_in = jax.random.normal(k1, (in_proj_dim, embed_dim), jnp.float32) \
        * (embed_dim ** -0.5) * (query_head_dim ** -0.25)
    b_in = jax.random.normal(k2, (in_proj_dim,), jnp.float32) * 0.01
    w_pos = jax.random.normal(k3, (num_heads * pos_head_dim, pos_dim), jnp.float32) \
        * (pos_dim ** -0.5) * 0.05

    x = jax.random.normal(k4, (seq_len, batch, embed_dim), jnp.float32)
    pos_emb = jax.random.normal(k5, (1, 2 * seq_len - 1, pos_dim), jnp.float32)

    # attn_mask (S, S): True = not allowed to attend (here: strictly-future positions)
    attn_mask = jnp.triu(jnp.ones((seq_len, seq_len), dtype=bool), k=1)
    # key_padding_mask (B, S): pad the last two frames of batch element 1
    key_padding_mask = jnp.zeros((batch, seq_len), dtype=bool).at[1, -2:].set(True)

    ref = _reference(x, pos_emb, w_in, b_in, w_pos, attn_mask, key_padding_mask,
                     num_heads=num_heads, query_head_dim=query_head_dim,
                     pos_head_dim=pos_head_dim)

    common = dict(num_heads=num_heads, query_head_dim=query_head_dim,
                  pos_head_dim=pos_head_dim)

    # 1) float32 compute path: validates the roll-based rel-shift / mask / softmax logic.
    fn_f32 = jax.jit(functools.partial(rel_pos_attn_weights,
                                       compute_dtype=jnp.float32, **common))
    out_f32 = jax.block_until_ready(
        fn_f32(x, pos_emb, w_in, b_in, w_pos, attn_mask, key_padding_mask))
    assert out_f32.shape == (num_heads, batch, seq_len, seq_len)
    err32 = jnp.max(jnp.abs(out_f32 - ref))
    assert jnp.allclose(out_f32, ref, atol=5e-3, rtol=0), f"f32 path max abs diff = {err32}"

    # 2) bf16-input / f32-accumulate path (the bandwidth-optimized configuration).
    fn_bf16 = jax.jit(functools.partial(rel_pos_attn_weights,
                                        compute_dtype=jnp.bfloat16, **common))
    out_bf16 = jax.block_until_ready(
        fn_bf16(x, pos_emb, w_in, b_in, w_pos, attn_mask, key_padding_mask))
    assert out_bf16.shape == (num_heads, batch, seq_len, seq_len)
    errbf = jnp.max(jnp.abs(out_bf16 - ref))
    assert jnp.allclose(out_bf16, ref, atol=3e-2, rtol=0), f"bf16 path max abs diff = {errbf}"

    print("KERNEL_OK")
</pallas_src>

<mosaic_0001>
module attributes {stable_mosaic.version = 11 : i64} {
  func.func @_attn_weights_kernel(%arg0: i32, %arg1: i32, %arg2: memref<1x1x8x8xf32, #tpu.memory_space<vmem>>, %arg3: memref<1x1x8x8xf32, #tpu.memory_space<vmem>>, %arg4: memref<1x1x8x4xf32, #tpu.memory_space<vmem>>, %arg5: memref<1x4x128xf32, #tpu.memory_space<vmem>>, %arg6: memref<8x8xf32, #tpu.memory_space<vmem>>, %arg7: memref<1x1x8xf32, #tpu.memory_space<vmem>>, %arg8: memref<1x1x8x8xf32, #tpu.memory_space<vmem>>) attributes {dimension_semantics = [#tpu.dimension_semantics<parallel>, #tpu.dimension_semantics<parallel>], iteration_bounds = array<i64: 2, 4>, scalar_prefetch = 0 : i64, scratch_operands = 0 : i64, tpu.core_type = #tpu.core_type<tc>, window_params = [{transform_indices = @transform_0, window_bounds = array<i64: 1, 1, 8, 8>}, {transform_indices = @transform_1, window_bounds = array<i64: 1, 1, 8, 8>}, {transform_indices = @transform_2, window_bounds = array<i64: 1, 1, 8, 4>}, {transform_indices = @transform_3, window_bounds = array<i64: 1, 4, 128>}, {pipeline_mode = #tpu.pipeline_mode<synchronous>, transform_indices = @transform_4, window_bounds = array<i64: 8, 8>}, {transform_indices = @transform_5, window_bounds = array<i64: 1, 1, 8>}, {transform_indices = @transform_6, window_bounds = array<i64: 1, 1, 8, 8>}]} {
    %c0 = arith.constant 0 : index
    %c0_0 = arith.constant 0 : index
    %c0_1 = arith.constant 0 : index
    %c0_2 = arith.constant 0 : index
    %0 = vector.load %arg2[%c0, %c0_0, %c0_1, %c0_2] : memref<1x1x8x8xf32, #tpu.memory_space<vmem>>, vector<1x1x8x8xf32>
    %1 = vector.shape_cast %0 : vector<1x1x8x8xf32> to vector<8x8xf32>
    %c0_3 = arith.constant 0 : index
    %c0_4 = arith.constant 0 : index
    %c0_5 = arith.constant 0 : index
    %c0_6 = arith.constant 0 : index
    %2 = vector.load %arg3[%c0_3, %c0_4, %c0_5, %c0_6] : memref<1x1x8x8xf32, #tpu.memory_space<vmem>>, vector<1x1x8x8xf32>
    %3 = vector.shape_cast %2 : vector<1x1x8x8xf32> to vector<8x8xf32>
    %cst = arith.constant dense<0.000000e+00> : vector<8x8xf32>
    %4 = tpu.matmul %1, %3, %cst {dimension_numbers = #tpu.dot_dimension_numbers<[1], [1], [0], [0], [0, 0, 1, 0], [], []>} : vector<8x8xf32>, vector<8x8xf32>, vector<8x8xf32> -> vector<8x8xf32>
    %c0_7 = arith.constant 0 : index
    %c0_8 = arith.constant 0 : index
    %c0_9 = arith.constant 0 : index
    %c0_10 = arith.constant 0 : index
    %5 = vector.load %arg4[%c0_7, %c0_8, %c0_9, %c0_10] : memref<1x1x8x4xf32, #tpu.memory_space<vmem>>, vector<1x1x8x4xf32>
    %6 = vector.shape_cast %5 : vector<1x1x8x4xf32> to vector<8x4xf32>
    %c0_11 = arith.constant 0 : index
    %c0_12 = arith.constant 0 : index
    %c0_13 = arith.constant 0 : index
    %7 = vector.load %arg5[%c0_11, %c0_12, %c0_13] : memref<1x4x128xf32, #tpu.memory_space<vmem>>, vector<1x4x128xf32>
    %8 = vector.shape_cast %7 : vector<1x4x128xf32> to vector<4x128xf32>
    %cst_14 = arith.constant dense<0.000000e+00> : vector<8x128xf32>
    %9 = tpu.matmul %6, %8, %cst_14 {dimension_numbers = #tpu.dot_dimension_numbers<[1], [0], [0], [1], [0, 0, 1, 1], [], []>} : vector<8x4xf32>, vector<4x128xf32>, vector<8x128xf32> -> vector<8x128xf32>
    %c0_i32 = arith.constant 0 : i32
    %10 = tpu.dynamic_rotate %9 by %c0_i32 dim 1 {stride = 1 : si32, stride_dimension = 0 : si32} : vector<8x128xf32>, i32 -> vector<8x128xf32>
    %11 = vector.extract_strided_slice %10 {offsets = [0, 7], sizes = [8, 8], strides = [1, 1]} : vector<8x128xf32> to vector<8x8xf32>
    %12 = arith.addf %4, %11 : vector<8x8xf32>
    %c0_15 = arith.constant 0 : index
    %c0_16 = arith.constant 0 : index
    %13 = vector.load %arg6[%c0_15, %c0_16] : memref<8x8xf32, #tpu.memory_space<vmem>>, vector<8x8xf32>
    %cst_17 = arith.constant 0.000000e+00 : f32
    %14 = vector.broadcast %cst_17 : f32 to vector<8x8xf32>
    %15 = arith.cmpf one, %13, %14 : vector<8x8xf32>
    %c0_18 = arith.constant 0 : index
    %c0_19 = arith.constant 0 : index
    %c0_20 = arith.constant 0 : index
    %16 = vector.load %arg7[%c0_18, %c0_19, %c0_20] : memref<1x1x8xf32, #tpu.memory_space<vmem>>, vector<1x1x8xf32>
    %17 = vector.shape_cast %16 : vector<1x1x8xf32> to vector<1x8xf32>
    %cst_21 = arith.constant 0.000000e+00 : f32
    %18 = vector.broadcast %cst_21 : f32 to vector<1x8xf32>
    %19 = arith.cmpf one, %17, %18 : vector<1x8xf32>
    %20 = vector.broadcast %19 : vector<1x8xi1> to vector<8x8xi1>
    %21 = arith.ori %15, %20 : vector<8x8xi1>
    %cst_22 = arith.constant -1.000000e+03 : f32
    %22 = vector.broadcast %cst_22 : f32 to vector<8x8xf32>
    %23 = arith.select %21, %22, %12 : vector<8x8xi1>, vector<8x8xf32>
    %cst_23 = arith.constant dense<0xFF800000> : vector<8xf32>
    %24 = vector.multi_reduction <maximumf>, %23, %cst_23 [1] : vector<8x8xf32> to vector<8xf32>
    %25 = vector.shape_cast %24 : vector<8xf32> to vector<8x1xf32>
    %26 = vector.broadcast %25 : vector<8x1xf32> to vector<8x8xf32>
    %27 = arith.subf %23, %26 : vector<8x8xf32>
    %28 = math.exp %27 : vector<8x8xf32>
    %cst_24 = arith.constant dense<0.000000e+00> : vector<8xf32>
    %29 = vector.multi_reduction <add>, %28, %cst_24 [1] : vector<8x8xf32> to vector<8xf32>
    %30 = vector.shape_cast %29 : vector<8xf32> to vector<8x1xf32>
    %31 = vector.broadcast %30 : vector<8x1xf32> to vector<8x8xf32>
    %32 = arith.divf %28, %31 : vector<8x8xf32>
    %c0_25 = arith.constant 0 : index
    %c0_26 = arith.constant 0 : index
    %c0_27 = arith.constant 0 : index
    %c0_28 = arith.constant 0 : index
    %33 = vector.load %arg8[%c0_25, %c0_26, %c0_27, %c0_28] : memref<1x1x8x8xf32, #tpu.memory_space<vmem>>, vector<1x1x8x8xf32>
    %34 = vector.shape_cast %33 : vector<1x1x8x8xf32> to vector<8x8xf32>
    %35 = vector.shape_cast %32 : vector<8x8xf32> to vector<1x1x8x8xf32>
    tpu.vector_store %arg8[%c0_25, %c0_26, %c0_27, %c0_28], %35 {strides = array<i32>} : memref<1x1x8x8xf32, #tpu.memory_space<vmem>>, vector<1x1x8x8xf32>,
    return
  }
  func.func @transform_0(%arg0: i32, %arg1: i32) -> (i32, i32, i32, i32) {
    %c0_i32 = arith.constant 0 : i32
    %c0_i32_0 = arith.constant 0 : i32
    %c0_i32_1 = arith.constant 0 : i32
    return %arg0, %arg1, %c0_i32, %c0_i32_0 : i32, i32, i32, i32
  }
  func.func @transform_1(%arg0: i32, %arg1: i32) -> (i32, i32, i32, i32) {
    %c0_i32 = arith.constant 0 : i32
    %c0_i32_0 = arith.constant 0 : i32
    %c0_i32_1 = arith.constant 0 : i32
    return %arg0, %arg1, %c0_i32, %c0_i32_0 : i32, i32, i32, i32
  }
  func.func @transform_2(%arg0: i32, %arg1: i32) -> (i32, i32, i32, i32) {
    %c0_i32 = arith.constant 0 : i32
    %c0_i32_0 = arith.constant 0 : i32
    %c0_i32_1 = arith.constant 0 : i32
    return %arg0, %arg1, %c0_i32, %c0_i32_0 : i32, i32, i32, i32
  }
  func.func @transform_3(%arg0: i32, %arg1: i32) -> (i32, i32, i32) {
    %c0_i32 = arith.constant 0 : i32
    %c0_i32_0 = arith.constant 0 : i32
    %c0_i32_1 = arith.constant 0 : i32
    return %arg1, %c0_i32, %c0_i32_0 : i32, i32, i32
  }
  func.func @transform_4(%arg0: i32, %arg1: i32) -> (i32, i32) {
    %c0_i32 = arith.constant 0 : i32
    %c0_i32_0 = arith.constant 0 : i32
    %c0_i32_1 = arith.constant 0 : i32
    return %c0_i32, %c0_i32_0 : i32, i32
  }
  func.func @transform_5(%arg0: i32, %arg1: i32) -> (i32, i32, i32) {
    %c0_i32 = arith.constant 0 : i32
    %c0_i32_0 = arith.constant 0 : i32
    %c0_i32_1 = arith.constant 0 : i32
    return %arg0, %c0_i32, %c0_i32_0 : i32, i32, i32
  }
  func.func @transform_6(%arg0: i32, %arg1: i32) -> (i32, i32, i32, i32) {
    %c0_i32 = arith.constant 0 : i32
    %c0_i32_0 = arith.constant 0 : i32
    %c0_i32_1 = arith.constant 0 : i32
    return %arg1, %arg0, %c0_i32, %c0_i32_0 : i32, i32, i32, i32
  }
}

</mosaic_0001>

<llo_original>
// kernel: rel_pos_attn_weights.1
$region0: #{rel_pos_attn_weights.1}
  #allocation0 [shape = 'u32[]', space=smem, size = 0x4, offset = 0x4, fixed_abs, tag = 'smem constant byte address 0x4 - core index']
  #allocation1 [shape = 'u32[144,128]{1,0:T(1,128)}', space=vmem, size = 0x12000, scoped, tag = 'internal scratch']
  %s0 = inlined_call_operand.vmem [shape: f32[2,4,8,8], index: 0, kind: input, shape index: {}]
  %s1 = inlined_call_operand.vmem [shape: f32[2,4,8,8], index: 1, kind: input, shape index: {}]
  %s2 = inlined_call_operand.vmem [shape: f32[2,4,8,4], index: 2, kind: input, shape index: {}]
  %s3 = inlined_call_operand.vmem [shape: f32[4,4,128], index: 3, kind: input, shape index: {}]
  %s4 = inlined_call_operand.vmem [shape: f32[8,8], index: 4, kind: input, shape index: {}]
  %s5 = inlined_call_operand.vmem [shape: f32[2,1,8], index: 5, kind: input, shape index: {}]
  %s6 = inlined_call_operand.hbm [shape: f32[4,2,8,8], index: 6, kind: output, shape index: {}]
  %s7 = sld [smem:[#allocation0]]
  $region57: #{rel_pos_attn_weights.1} parent=0
    _
  %s9 = ssub.s32 1, %s7
  %s10 = scalar_select 0, %s9, %s7
  $region1: #{rel_pos_attn_weights.1} parent=0
    #allocation2 [shape = 'u8[8192]{0}', space=vmem, size = 0x2000, scoped, tag = 'output window, operand 0']
    #allocation3 [shape = 's32[2]{0}', space=sflag, size = 0x8, scoped, tag = 'scoped memory for rel_pos_attn_weights.1']
    %11 = vsyncpa [#allocation3], 0
    %s12 = scalar_lea.sflag [#allocation3], 1
    %13 = vsyncpa %s12, 0
    loop: start=0, step=1, limit=10
    $region2: #{rel_pos_attn_weights.1} parent=1 // loop_pre_header
      _
    $region3: #{rel_pos_attn_weights.1} parent=1 // loop_header
      %s15 = sphi 0, %s19
      %p16 = scmp.ge.s32.totalorder %s15, 10
      %s22 = sphi 0, %s34
      %s23 = sphi 0, %s30
      %s24 = sphi 0, %s22
      %s25 = sphi 0, %s23
      %s26 = sphi 0, %s24
      %s27 = sphi 0, %s25
      %s39 = sphi 0, %s41
      %s42 = sphi 0, %s39
      %s43 = sphi 0, %s42
      %s59 = sphi 0, %s43
      %s67 = sphi 0, %s69
      %s70 = sphi 0, %s67
      %s71 = sphi 0, %s70
      %s87 = sphi 0, %s71
      %s95 = sphi 0, %s97
      %s98 = sphi 0, %s95
      %s99 = sphi 0, %s98
      %s115 = sphi 0, %s99
      %s121 = sphi 0, %s123
      %s124 = sphi 0, %s121
      %s125 = sphi 0, %s124
      %s141 = sphi 0, %s125
      %s145 = sphi 0, %s145
      %s147 = sphi 0, %s145
      %s148 = sphi 0, %s147
      %s162 = sphi 0, %s148
      %s168 = sphi 0, %s170
      %s171 = sphi 0, %s168
      %s172 = sphi 0, %s171
      %s188 = sphi 0, %s172
      %s196 = sphi 0, %s198
      %s199 = sphi 0, %s196
      %s200 = sphi 0, %s199
      %s216 = sphi 0, %s200
    $region4: #{rel_pos_attn_weights.1} parent=1 // loop_header_branch
      %18 = sbr.rel (%p16) target = $region8
    $region5: #{rel_pos_attn_weights.1} parent=1 // loop_body
      %s20 = ssub.s32 %s15, 1
      %s21 = ssub.s32 %s15, 2
      %s28 = sadd.s32 1, %s23
      %p29 = scmp.ge.s32.totalorder %s28, 4
      %s30 = scalar_select %p29, 0, %s28
      %s31 = sadd.s32 1, %s22
      %s32 = scalar_select %p29, %s31, %s22
      %p33 = scmp.ge.s32.totalorder %s32, 2
      %s34 = scalar_select %p33, 0, %s32
      %s35 = ssub.s32 %s22, %s34
      %s36 = ssub.s32 %s23, %s30
      %s37 = sor.u32 %s35, %s36
      %p38 = scmp.eq.s32.totalorder %s37, 0
      %s40 = sadd.s32 %s39, 1
      %s41 = scalar_select %p38, %s39, %s40
      %p44 = pneg %p38
      %p45 = scmp.eq.s32.totalorder %s15, 7
      %p46 = por %p44, %p45
      %p47 = scmp.ne.s32.totalorder %s39, %s42
      %p48 = scmp.eq.s32.totalorder %s15, 0
      %p49 = por %p47, %p48
      %p50 = scmp.ne.s32.totalorder %s39, %s42
      %p51 = scmp.eq.s32.totalorder %s20, 7
      %p52 = por %p50, %p51
      %p53 = scmp.ne.s32.totalorder %s42, %s43
      %p54 = scmp.eq.s32.totalorder %s20, 0
      %p55 = por %p53, %p54
      %p56 = scmp.ne.s32.totalorder %s42, %s43
      %p57 = scmp.eq.s32.totalorder %s21, 7
      %p58 = por %p56, %p57
      %p60 = scmp.ne.s32.totalorder %s43, %s59
      %p61 = scmp.eq.s32.totalorder %s21, 0
      %p62 = por %p60, %p61
      %s63 = ssub.s32 %s22, %s34
      %s64 = ssub.s32 %s23, %s30
      %s65 = sor.u32 %s63, %s64
      %p66 = scmp.eq.s32.totalorder %s65, 0
      %s68 = sadd.s32 %s67, 1
      %s69 = scalar_select %p66, %s67, %s68
      %p72 = pneg %p66
      %p73 = scmp.eq.s32.totalorder %s15, 7
      %p74 = por %p72, %p73
      %p75 = scmp.ne.s32.totalorder %s67, %s70
      %p76 = scmp.eq.s32.totalorder %s15, 0
      %p77 = por %p75, %p76
      %p78 = scmp.ne.s32.totalorder %s67, %s70
      %p79 = scmp.eq.s32.totalorder %s20, 7
      %p80 = por %p78, %p79
      %p81 = scmp.ne.s32.totalorder %s70, %s71
      %p82 = scmp.eq.s32.totalorder %s20, 0
      %p83 = por %p81, %p82
      %p84 = scmp.ne.s32.totalorder %s70, %s71
      %p85 = scmp.eq.s32.totalorder %s21, 7
      %p86 = por %p84, %p85
      %p88 = scmp.ne.s32.totalorder %s71, %s87
      %p89 = scmp.eq.s32.totalorder %s21, 0
      %p90 = por %p88, %p89
      %s91 = ssub.s32 %s22, %s34
      %s92 = ssub.s32 %s23, %s30
      %s93 = sor.u32 %s91, %s92
      %p94 = scmp.eq.s32.totalorder %s93, 0
      %s96 = sadd.s32 %s95, 1
      %s97 = scalar_select %p94, %s95, %s96
      %p100 = pneg %p94
      %p101 = scmp.eq.s32.totalorder %s15, 7
      %p102 = por %p100, %p101
      %p103 = scmp.ne.s32.totalorder %s95, %s98
      %p104 = scmp.eq.s32.totalorder %s15, 0
      %p105 = por %p103, %p104
      %p106 = scmp.ne.s32.totalorder %s95, %s98
      %p107 = scmp.eq.s32.totalorder %s20, 7
      %p108 = por %p106, %p107
      %p109 = scmp.ne.s32.totalorder %s98, %s99
      %p110 = scmp.eq.s32.totalorder %s20, 0
      %p111 = por %p109, %p110
      %p112 = scmp.ne.s32.totalorder %s98, %s99
      %p113 = scmp.eq.s32.totalorder %s21, 7
      %p114 = por %p112, %p113
      %p116 = scmp.ne.s32.totalorder %s99, %s115
      %p117 = scmp.eq.s32.totalorder %s21, 0
      %p118 = por %p116, %p117
      %s119 = ssub.s32 %s23, %s30
      %p120 = scmp.eq.s32.totalorder %s119, 0
      %s122 = sadd.s32 %s121, 1
      %s123 = scalar_select %p120, %s121, %s122
      %p126 = pneg %p120
      %p127 = scmp.eq.s32.totalorder %s15, 7
      %p128 = por %p126, %p127
      %p129 = scmp.ne.s32.totalorder %s121, %s124
      %p130 = scmp.eq.s32.totalorder %s15, 0
      %p131 = por %p129, %p130
      %p132 = scmp.ne.s32.totalorder %s121, %s124
      %p133 = scmp.eq.s32.totalorder %s20, 7
      %p134 = por %p132, %p133
      %p135 = scmp.ne.s32.totalorder %s124, %s125
      %p136 = scmp.eq.s32.totalorder %s20, 0
      %p137 = por %p135, %p136
      %p138 = scmp.ne.s32.totalorder %s124, %s125
      %p139 = scmp.eq.s32.totalorder %s21, 7
      %p140 = por %p138, %p139
      %p142 = scmp.ne.s32.totalorder %s125, %s141
      %p143 = scmp.eq.s32.totalorder %s21, 0
      %p144 = por %p142, %p143
      %s146 = sadd.s32 %s145, 1
      %p149 = scmp.eq.s32.totalorder %s15, 7
      %p150 = scmp.ne.s32.totalorder %s145, %s147
      %p151 = scmp.eq.s32.totalorder %s15, 0
      %p152 = por %p150, %p151
      %p153 = scmp.ne.s32.totalorder %s145, %s147
      %p154 = scmp.eq.s32.totalorder %s20, 7
      %p155 = por %p153, %p154
      %p156 = scmp.ne.s32.totalorder %s147, %s148
      %p157 = scmp.eq.s32.totalorder %s20, 0
      %p158 = por %p156, %p157
      %p159 = scmp.ne.s32.totalorder %s147, %s148
      %p160 = scmp.eq.s32.totalorder %s21, 7
      %p161 = por %p159, %p160
      %p163 = scmp.ne.s32.totalorder %s148, %s162
      %p164 = scmp.eq.s32.totalorder %s21, 0
      %p165 = por %p163, %p164
      %s166 = ssub.s32 %s22, %s34
      %p167 = scmp.eq.s32.totalorder %s166, 0
      %s169 = sadd.s32 %s168, 1
      %s170 = scalar_select %p167, %s168, %s169
      %p173 = pneg %p167
      %p174 = scmp.eq.s32.totalorder %s15, 7
      %p175 = por %p173, %p174
      %p176 = scmp.ne.s32.totalorder %s168, %s171
      %p177 = scmp.eq.s32.totalorder %s15, 0
      %p178 = por %p176, %p177
      %p179 = scmp.ne.s32.totalorder %s168, %s171
      %p180 = scmp.eq.s32.totalorder %s20, 7
      %p181 = por %p179, %p180
      %p182 = scmp.ne.s32.totalorder %s171, %s172
      %p183 = scmp.eq.s32.totalorder %s20, 0
      %p184 = por %p182, %p183
      %p185 = scmp.ne.s32.totalorder %s171, %s172
      %p186 = scmp.eq.s32.totalorder %s21, 7
      %p187 = por %p185, %p186
      %p189 = scmp.ne.s32.totalorder %s172, %s188
      %p190 = scmp.eq.s32.totalorder %s21, 0
      %p191 = por %p189, %p190
      %s192 = ssub.s32 %s23, %s30
      %s193 = ssub.s32 %s22, %s34
      %s194 = sor.u32 %s192, %s193
      %p195 = scmp.eq.s32.totalorder %s194, 0
      %s197 = sadd.s32 %s196, 1
      %s198 = scalar_select %p195, %s196, %s197
      %p201 = pneg %p195
      %p202 = scmp.eq.s32.totalorder %s15, 7
      %p203 = por %p201, %p202
      %p204 = scmp.ne.s32.totalorder %s196, %s199
      %p205 = scmp.eq.s32.totalorder %s15, 0
      %p206 = por %p204, %p205
      %p207 = scmp.ne.s32.totalorder %s196, %s199
      %p208 = scmp.eq.s32.totalorder %s20, 7
      %p209 = por %p207, %p208
      %p210 = scmp.ne.s32.totalorder %s199, %s200
      %p211 = scmp.eq.s32.totalorder %s20, 0
      %p212 = por %p210, %p211
      %p213 = scmp.ne.s32.totalorder %s199, %s200
      %p214 = scmp.eq.s32.totalorder %s21, 7
      %p215 = por %p213, %p214
      %p217 = scmp.ne.s32.totalorder %s200, %s216
      %p218 = scmp.eq.s32.totalorder %s21, 0
      %p219 = por %p217, %p218
      %p220 = scmp.le.s32.totalorder 1, %s15
      %p221 = scmp.lt.s32.totalorder %s15, 9
      %p222 = pnand %p220, %p221
      %p223 = pneg %p222
      // Predicated region
      $region9: #{rel_pos_attn_weights.1} parent=5 // pred_check
        _
      $region10: #{rel_pos_attn_weights.1} parent=5 // pred_check_branch
        %225 = sbr.rel (%p222) target = $region12
      $region11: #{rel_pos_attn_weights.1} parent=5 // pred_region
        %s226 = ssub.s32 %s15, 1
        // Predicated region
        $region13: #{rel_pos_attn_weights.1} parent=11 // pred_check
          %p227 = pneg %p158
        $region14: #{rel_pos_attn_weights.1} parent=11 // pred_check_branch
          %229 = sbr.rel (%p227) target = $region16
        $region15: #{rel_pos_attn_weights.1} parent=11 // pred_region
          _
        $region16: #{rel_pos_attn_weights.1} parent=11 // pred_fallthru
          _
      $region12: #{rel_pos_attn_weights.1} parent=5 // pred_fallthru
        _
      %p230 = scmp.lt.s32.totalorder %s15, 8
      // Predicated region
      $region17: #{rel_pos_attn_weights.1} parent=5 // pred_check
        %p231 = pneg %p230
      $region18: #{rel_pos_attn_weights.1} parent=5 // pred_check_branch
        %233 = sbr.rel (%p231) target = $region20
      $region19: #{rel_pos_attn_weights.1} parent=5 // pred_region
        // Predicated region
        $region21: #{rel_pos_attn_weights.1} parent=19 // pred_check
          %p234 = pneg %p49
        $region22: #{rel_pos_attn_weights.1} parent=19 // pred_check_branch
          %236 = sbr.rel (%p234) target = $region24
        $region23: #{rel_pos_attn_weights.1} parent=19 // pred_region
          %p237 = scmp.lt.s32.totalorder %s22, 1
          %s238 = scalar_select %p237, %s22, 1
          %p239 = scmp.lt.s32.totalorder %s23, 3
          %s240 = scalar_select %p239, %s23, 3
          %s241 = smul.addr %s238, 4
          %s242 = sadd.s32 %s240, %s241
          %s243 = smul.addr %s242, 8
          %s244 = scalar_lea.vmem %s0, %s243
        $region24: #{rel_pos_attn_weights.1} parent=19 // pred_fallthru
          _
        // Predicated region
        $region25: #{rel_pos_attn_weights.1} parent=19 // pred_check
          %p245 = pneg %p77
        $region26: #{rel_pos_attn_weights.1} parent=19 // pred_check_branch
          %247 = sbr.rel (%p245) target = $region28
        $region27: #{rel_pos_attn_weights.1} parent=19 // pred_region
          %p248 = scmp.lt.s32.totalorder %s22, 1
          %s249 = scalar_select %p248, %s22, 1
          %p250 = scmp.lt.s32.totalorder %s23, 3
          %s251 = scalar_select %p250, %s23, 3
          %s252 = smul.addr %s249, 4
          %s253 = sadd.s32 %s251, %s252
          %s254 = smul.addr %s253, 8
          %s255 = scalar_lea.vmem %s1, %s254
        $region28: #{rel_pos_attn_weights.1} parent=19 // pred_fallthru
          _
        // Predicated region
        $region29: #{rel_pos_attn_weights.1} parent=19 // pred_check
          %p256 = pneg %p105
        $region30: #{rel_pos_attn_weights.1} parent=19 // pred_check_branch
          %258 = sbr.rel (%p256) target = $region32
        $region31: #{rel_pos_attn_weights.1} parent=19 // pred_region
          %p259 = scmp.lt.s32.totalorder %s22, 1
          %s260 = scalar_select %p259, %s22, 1
          %p261 = scmp.lt.s32.totalorder %s23, 3
          %s262 = scalar_select %p261, %s23, 3
          %s263 = smul.addr %s260, 4
          %s264 = sadd.s32 %s262, %s263
          %s265 = smul.addr %s264, 8
          %s266 = scalar_lea.vmem %s2, %s265
        $region32: #{rel_pos_attn_weights.1} parent=19 // pred_fallthru
          _
        // Predicated region
        $region33: #{rel_pos_attn_weights.1} parent=19 // pred_check
          %p267 = pneg %p131
        $region34: #{rel_pos_attn_weights.1} parent=19 // pred_check_branch
          %269 = sbr.rel (%p267) target = $region36
        $region35: #{rel_pos_attn_weights.1} parent=19 // pred_region
          %p270 = scmp.lt.s32.totalorder %s23, 3
          %s271 = scalar_select %p270, %s23, 3
          %s272 = smul.addr %s271, 4
          %s273 = scalar_lea.vmem %s3, %s272
        $region36: #{rel_pos_attn_weights.1} parent=19 // pred_fallthru
          _
        // Predicated region
        $region37: #{rel_pos_attn_weights.1} parent=19 // pred_check
          %p274 = pneg %p178
        $region38: #{rel_pos_attn_weights.1} parent=19 // pred_check_branch
          %276 = sbr.rel (%p274) target = $region40
        $region39: #{rel_pos_attn_weights.1} parent=19 // pred_region
          %p277 = scmp.lt.s32.totalorder %s22, 1
          %s278 = scalar_select %p277, %s22, 1
          %s279 = scalar_lea.vmem %s5, %s278
        $region40: #{rel_pos_attn_weights.1} parent=19 // pred_fallthru
          _
      $region20: #{rel_pos_attn_weights.1} parent=5 // pred_fallthru
        _
      %p280 = scmp.le.s32.totalorder 1, %s15
      %p281 = scmp.lt.s32.totalorder %s15, 9
      %p282 = pnand %p280, %p281
      %p283 = pneg %p282
      // Predicated region
      $region41: #{rel_pos_attn_weights.1} parent=5 // pred_check
        _
      $region42: #{rel_pos_attn_weights.1} parent=5 // pred_check_branch
        %285 = sbr.rel (%p282) target = $region44
      $region43: #{rel_pos_attn_weights.1} parent=5 // pred_region
        %s286 = ssub.s32 %s15, 1
        %p287 = scmp.lt.s32.totalorder %s24, 1
        %s288 = scalar_select %p287, %s24, 1
        %p289 = scmp.lt.s32.totalorder %s25, 3
        %s290 = scalar_select %p289, %s25, 3
        %s291 = smul.addr %s288, 4
        %s292 = sadd.s32 %s290, %s291
        %s293 = smul.addr %s292, 8
        %s294 = scalar_lea.vmem %s0, %s293
        %p295 = pneg %p55
        %p296 = pneg %p52
        %p297 = scmp.lt.s32.totalorder %s24, 1
        %s298 = scalar_select %p297, %s24, 1
        %p299 = scmp.lt.s32.totalorder %s25, 3
        %s300 = scalar_select %p299, %s25, 3
        %s301 = smul.addr %s298, 4
        %s302 = sadd.s32 %s300, %s301
        %s303 = smul.addr %s302, 8
        %s304 = scalar_lea.vmem %s1, %s303
        %p305 = pneg %p83
        %p306 = pneg %p80
        %p307 = scmp.lt.s32.totalorder %s24, 1
        %s308 = scalar_select %p307, %s24, 1
        %p309 = scmp.lt.s32.totalorder %s25, 3
        %s310 = scalar_select %p309, %s25, 3
        %s311 = smul.addr %s308, 4
        %s312 = sadd.s32 %s310, %s311
        %s313 = smul.addr %s312, 8
        %s314 = scalar_lea.vmem %s2, %s313
        %p315 = pneg %p111
        %p316 = pneg %p108
        %p317 = scmp.lt.s32.totalorder %s25, 3
        %s318 = scalar_select %p317, %s25, 3
        %s319 = smul.addr %s318, 4
        %s320 = scalar_lea.vmem %s3, %s319
        %p321 = pneg %p137
        %p322 = pneg %p134
        %p323 = pneg %p158
        %p324 = pneg %p155
        %p325 = scmp.lt.s32.totalorder %s24, 1
        %s326 = scalar_select %p325, %s24, 1
        %s327 = scalar_lea.vmem %s5, %s326
        %p328 = pneg %p184
        %p329 = pneg %p181
        %p330 = pneg %p212
        %p331 = pneg %p209
        %s332 = sand.u32 %s199, 1
        %s333 = scalar_lea.sflag [#allocation3], %s332
        %s334 = sand.u32 %s199, 1
        %s335 = smul.addr %s334, 8
        %s336 = scalar_lea.vmem [#allocation2], %s335
        %p337 = scmp.lt.s32.totalorder %s24, 1
        %s338 = scalar_select %p337, %s24, 1
        %p339 = scmp.lt.s32.totalorder %s25, 3
        %s340 = scalar_select %p339, %s25, 3
        %s341 = smul.addr %s338, 4
        %s342 = sadd.s32 %s340, %s341
        %s343 = smul.addr %s342, 8
        %s344 = scalar_lea.vmem %s0, %s343
        %p345 = scmp.lt.s32.totalorder %s24, 1
        %s346 = scalar_select %p345, %s24, 1
        %p347 = scmp.lt.s32.totalorder %s25, 3
        %s348 = scalar_select %p347, %s25, 3
        %s349 = smul.addr %s346, 4
        %s350 = sadd.s32 %s348, %s349
        %s351 = smul.addr %s350, 8
        %s352 = scalar_lea.vmem %s1, %s351
        %p353 = scmp.lt.s32.totalorder %s24, 1
        %s354 = scalar_select %p353, %s24, 1
        %p355 = scmp.lt.s32.totalorder %s25, 3
        %s356 = scalar_select %p355, %s25, 3
        %s357 = smul.addr %s354, 4
        %s358 = sadd.s32 %s356, %s357
        %s359 = smul.addr %s358, 8
        %s360 = scalar_lea.vmem %s2, %s359
        %p361 = scmp.lt.s32.totalorder %s25, 3
        %s362 = scalar_select %p361, %s25, 3
        %s363 = smul.addr %s362, 4
        %s364 = scalar_lea.vmem %s3, %s363
        %p365 = scmp.lt.s32.totalorder %s24, 1
        %s366 = scalar_select %p365, %s24, 1
        %s367 = scalar_lea.vmem %s5, %s366
        %v368 = vld [vmem:[%s344] sm:$0xff]
        %v369 = vld [vmem:[%s352] sm:$0xff]
        %v370 = vld [vmem:[%s360] sm:$0xff]
        %v371 = vld [vmem:[%s364] sm:$0xf]
        %vm372 = vcmask 31744
        %v374 = vsel %vm372, %v370, 0
        %vm376 = vcmask 1043456
        %v378 = vsel %vm376, %v371, 0
        %380 = vmatprep.subr.mxu0 0.0
        %381 = vmatpush1.msra.mxu0 0.0
        %382 = vmatprep.subr.mxu0 0.0
        %383 = vmatpush1.msra.mxu0 0.0
        %384 = vmatprep.subr.mxu0 0.0
        %385 = vmatpush1.msra.mxu0 0.0
        %386 = vmatprep.subr.mxu0 0.0
        %387 = vmatpush1.msra.mxu0 0.0
        %388 = vmatprep.subr.mxu0 0.0
        %389 = vmatpush1.msra.mxu0 0.0
        %390 = vmatprep.subr.mxu0 0.0
        %391 = vmatpush1.msra.mxu0 0.0
        %392 = vmatprep.subr.mxu0 0.0
        %393 = vmatpush1.msra.mxu0 0.0
        %394 = vmatprep.subr.mxu0 0.0
        %395 = vmatpush1.msra.mxu0 0.0
        %396 = vmatprep.subr.mxu0 0.0
        %397 = vmatpush1.msra.mxu0 0.0
        %398 = vmatprep.subr.mxu0 0.0
        %399 = vmatpush1.msra.mxu0 0.0
        %400 = vmatprep.subr.mxu0 0.0
        %401 = vmatpush1.msra.mxu0 0.0
        %402 = vmatprep.subr.mxu0 0.0
        %403 = vmatpush1.msra.mxu0 0.0
        %404 = vmatprep.subr.mxu0 0.0
        %405 = vmatpush1.msra.mxu0 0.0
        %406 = vmatprep.subr.mxu0 0.0
        %407 = vmatpush1.msra.mxu0 0.0
        %408 = vmatprep.subr.mxu0 0.0
        %409 = vmatpush1.msra.mxu0 0.0
        %410 = vmatprep.subr.mxu0 0.0
        %411 = vmatpush1.msra.mxu0 %v378
        %412 = vmatprep.subr.mxu0 0.0
        %413 = vmatpush2.msra.mxu0 0.0
        %414 = vmatprep.subr.mxu0 0.0
        %415 = vmatpush2.msra.mxu0 0.0
        %416 = vmatprep.subr.mxu0 0.0
        %417 = vmatpush2.msra.mxu0 0.0
        %418 = vmatprep.subr.mxu0 0.0
        %419 = vmatpush2.msra.mxu0 0.0
        %420 = vmatprep.subr.mxu0 0.0
        %421 = vmatpush2.msra.mxu0 0.0
        %422 = vmatprep.subr.mxu0 0.0
        %423 = vmatpush2.msra.mxu0 0.0
        %424 = vmatprep.subr.mxu0 0.0
        %425 = vmatpush2.msra.mxu0 0.0
        %426 = vmatprep.subr.mxu0 0.0
        %427 = vmatpush2.msra.mxu0 0.0
        %428 = vmatprep.subr.mxu0 0.0
        %429 = vmatpush2.msra.mxu0 0.0
        %430 = vmatprep.subr.mxu0 0.0
        %431 = vmatpush2.msra.mxu0 0.0
        %432 = vmatprep.subr.mxu0 0.0
        %433 = vmatpush2.msra.mxu0 0.0
        %434 = vmatprep.subr.mxu0 0.0
        %435 = vmatpush2.msra.mxu0 0.0
        %436 = vmatprep.subr.mxu0 0.0
        %437 = vmatpush2.msra.mxu0 0.0
        %438 = vmatprep.subr.mxu0 0.0
        %439 = vmatpush2.msra.mxu0 0.0
        %440 = vmatprep.subr.mxu0 0.0
        %441 = vmatpush2.msra.mxu0 0.0
        %442 = vmatprep.subr.mxu0 0.0
        %443 = vmatpush2.msra.mxu0 0.0
        %444 = vmatprep.mubr.f32.mxu0 0.0
        %445 = vmatmul.mubr.f32.gmra.mxu0 %v374
        %v446 = vpop.f32.mrf.mxu0
        %v447 = vadd.f32 0.0, %v446
        %v448 = vpop.f32.mrf.mxu0
        %449 = vdwg.mxu0
        %451 = vrot.lane.b32.xlu0 %v447, 256
        %v452 = vpop.permute.xlu0 %451
        %454 = vrot.lane.b32.xlu0 %v452, 121
        %v455 = vpop.permute.xlu0 %454
        %vm457 = vcmask 64512
        %v459 = vsel %vm457, %v368, 0
        %v462 = vsel %vm457, %v369, 0
        %464 = vmatprep.subr.mxu0 0.0
        %465 = vmatpush1.xpose.msra.mxu0 0.0
        %466 = vmatprep.subr.mxu0 0.0
        %467 = vmatpush1.xpose.msra.mxu0 0.0
        %468 = vmatprep.subr.mxu0 0.0
        %469 = vmatpush1.xpose.msra.mxu0 0.0
        %470 = vmatprep.subr.mxu0 0.0
        %471 = vmatpush1.xpose.msra.mxu0 0.0
        %472 = vmatprep.subr.mxu0 0.0
        %473 = vmatpush1.xpose.msra.mxu0 0.0
        %474 = vmatprep.subr.mxu0 0.0
        %475 = vmatpush1.xpose.msra.mxu0 0.0
        %476 = vmatprep.subr.mxu0 0.0
        %477 = vmatpush1.xpose.msra.mxu0 0.0
        %478 = vmatprep.subr.mxu0 0.0
        %479 = vmatpush1.xpose.msra.mxu0 0.0
        %480 = vmatprep.subr.mxu0 0.0
        %481 = vmatpush1.xpose.msra.mxu0 0.0
        %482 = vmatprep.subr.mxu0 0.0
        %483 = vmatpush1.xpose.msra.mxu0 0.0
        %484 = vmatprep.subr.mxu0 0.0
        %485 = vmatpush1.xpose.msra.mxu0 0.0
        %486 = vmatprep.subr.mxu0 0.0
        %487 = vmatpush1.xpose.msra.mxu0 0.0
        %488 = vmatprep.subr.mxu0 0.0
        %489 = vmatpush1.xpose.msra.mxu0 0.0
        %490 = vmatprep.subr.mxu0 0.0
        %491 = vmatpush1.xpose.msra.mxu0 0.0
        %492 = vmatprep.subr.mxu0 0.0
        %493 = vmatpush1.xpose.msra.mxu0 0.0
        %494 = vmatprep.subr.mxu0 0.0
        %495 = vmatpush1.xpose.msra.mxu0 %v462
        %496 = vmatprep.subr.mxu0 0.0
        %497 = vmatpush2.xpose.msra.mxu0 0.0
        %498 = vmatprep.subr.mxu0 0.0
        %499 = vmatpush2.xpose.msra.mxu0 0.0
        %500 = vmatprep.subr.mxu0 0.0
        %501 = vmatpush2.xpose.msra.mxu0 0.0
        %502 = vmatprep.subr.mxu0 0.0
        %503 = vmatpush2.xpose.msra.mxu0 0.0
        %504 = vmatprep.subr.mxu0 0.0
        %505 = vmatpush2.xpose.msra.mxu0 0.0
        %506 = vmatprep.subr.mxu0 0.0
        %507 = vmatpush2.xpose.msra.mxu0 0.0
        %508 = vmatprep.subr.mxu0 0.0
        %509 = vmatpush2.xpose.msra.mxu0 0.0
        %510 = vmatprep.subr.mxu0 0.0
        %511 = vmatpush2.xpose.msra.mxu0 0.0
        %512 = vmatprep.subr.mxu0 0.0
        %513 = vmatpush2.xpose.msra.mxu0 0.0
        %514 = vmatprep.subr.mxu0 0.0
        %515 = vmatpush2.xpose.msra.mxu0 0.0
        %516 = vmatprep.subr.mxu0 0.0
        %517 = vmatpush2.xpose.msra.mxu0 0.0
        %518 = vmatprep.subr.mxu0 0.0
        %519 = vmatpush2.xpose.msra.mxu0 0.0
        %520 = vmatprep.subr.mxu0 0.0
        %521 = vmatpush2.xpose.msra.mxu0 0.0
        %522 = vmatprep.subr.mxu0 0.0
        %523 = vmatpush2.xpose.msra.mxu0 0.0
        %524 = vmatprep.subr.mxu0 0.0
        %525 = vmatpush2.xpose.msra.mxu0 0.0
        %526 = vmatprep.subr.mxu0 0.0
        %527 = vmatpush2.xpose.msra.mxu0 0.0
        %528 = vmatprep.mubr.f32.mxu0 0.0
        %529 = vmatmul.mubr.f32.gmra.mxu0 %v459
        %v530 = vpop.f32.mrf.mxu0
        %v531 = vadd.f32 %v455, %v530
        %v532 = vpop.f32.mrf.mxu0
        %533 = vdwg.mxu0
        %v534 = vld [vmem:[%s4] sm:$0xff]
        %vm535 = vcmp.ne.f32.partialorder %v534, 0.0
        %v536 = vld [vmem:[%s367] sm:$0x1]
        %vm537 = vcmp.ne.f32.partialorder %v536, 0.0
        %v538 = vsel %vm537, 1, 0
        %v539 = vlaneseq
        %v540 = vshrl.u32 %v539, 7
        %v541 = vsub.s32 0, %v540
        %v542 = vrot.slane %v538, %v541
        %vm543 = vcmp.eq.s32.totalorder %v542, 1
        %vm544 = vmor %vm535, %vm543
        %v545 = vsel %vm544, -1000.0, %v531
        %v546 = vsel %vm457, %v545, -inf
        %547 = vmax.xlane.f32.xlu0 %v546
        %v548 = vpop.xlane.xlu0 %547
        %v549 = vsub.f32 %v545, %v548
        %v550 = vmul.f32 %v549, 1.442695
        %v551 = vpow.pop %v550
        %v552 = vsel %vm457, %v551, 0.0
        %553 = vadd.xlane.f32.xlu0 %v552
        %v554 = vpop.xlane.xlu0 %553
        %v555 = vrcp.pop %v554
        %v556 = vmul.f32 %v551, %v555
        %557 = vst.msk [vmem:[%s336] sm:$0xff] %vm457, %v556
        %s558 = sand.u32 %s199, 1
        %s559 = scalar_lea.sflag [#allocation3], %s558
        %s560 = sand.u32 %s199, 1
        %s561 = smul.addr %s560, 8
        %s562 = scalar_lea.vmem [#allocation2], %s561
        // Predicated region
        $region45: #{rel_pos_attn_weights.1} parent=43 // pred_check
          %p563 = pneg %p209
        $region46: #{rel_pos_attn_weights.1} parent=43 // pred_check_branch
          %565 = sbr.rel (%p563) target = $region48
        $region47: #{rel_pos_attn_weights.1} parent=43 // pred_region
          %s567 = ssub.s32 128, 128
          %568 = vsyncadd %s559, %s567
          %s569 = smul.addr %s25, 2
          %s570 = sadd.s32 %s24, %s569
          %s571 = smul.addr %s570, 128
          %s572 = scalar_lea.hbm %s6, %s571
          %s574 = sshll.u32 %s562, 4
          %s575 = int_to_ptr.vmem [resolvable:$true] %s574
          %577 = dma.vmem_to_hbm [thread:$0]  %s575, 128, %s572, %s559
        $region48: #{rel_pos_attn_weights.1} parent=43 // pred_fallthru
          _
      $region44: #{rel_pos_attn_weights.1} parent=5 // pred_fallthru
        _
      %p578 = scmp.le.s32.totalorder 2, %s15
      // Predicated region
      $region49: #{rel_pos_attn_weights.1} parent=5 // pred_check
        %p579 = pneg %p578
      $region50: #{rel_pos_attn_weights.1} parent=5 // pred_check_branch
        %581 = sbr.rel (%p579) target = $region52
      $region51: #{rel_pos_attn_weights.1} parent=5 // pred_region
        %s582 = ssub.s32 %s15, 2
        // Predicated region
        $region53: #{rel_pos_attn_weights.1} parent=51 // pred_check
          %p583 = pneg %p215
        $region54: #{rel_pos_attn_weights.1} parent=51 // pred_check_branch
          %585 = sbr.rel (%p583) target = $region56
        $region55: #{rel_pos_attn_weights.1} parent=51 // pred_region
          %s586 = sand.u32 %s200, 1
          %s587 = scalar_lea.sflag [#allocation3], %s586
          %s588 = sand.u32 %s200, 1
          %s589 = smul.addr %s588, 8
          %s590 = scalar_lea.vmem [#allocation2], %s589
          %591 = dma.done %s587, 128
        $region56: #{rel_pos_attn_weights.1} parent=51 // pred_fallthru
          _
      $region52: #{rel_pos_attn_weights.1} parent=5 // pred_fallthru
        _
    $region6: #{rel_pos_attn_weights.1} parent=1 // loop_footer
      %s19 = sadd.s32 1, %s15
    $region7: #{rel_pos_attn_weights.1} parent=1 // loop_footer_branch
      %14 = sbr.rel target = $region3
    $region8: #{rel_pos_attn_weights.1} parent=1 // loop_exit
      _
    %592 = vsyncpa [#allocation3], 1
    %s593 = scalar_lea.sflag [#allocation3], 1
    %594 = vsyncpa %s593, 1

</llo_original>
